<compile_context>
chip_gen: v6e
topology: v6e:2x2x1
jax: 0.10.0
libtpu: 0.0.40
codegen_flags: <defaults>
</compile_context>

<pallas_src>
import functools

import jax
import jax.numpy as jnp
from jax.experimental import pallas as pl
from jax.experimental.pallas import tpu as pltpu


# ---------------------------------------------------------------------------
# Tiling / VMEM budget helpers.
# ---------------------------------------------------------------------------
def _vmem_budget():
    """Returns (activation bytes per block, vmem_limit_bytes) per TPU generation."""
    vmem_cap = 128 << 20
    try:
        info = pltpu.get_tpu_info()
        cap = getattr(info, "vmem_capacity_bytes", None)
        if cap:
            vmem_cap = int(cap)
    except Exception:  # query unavailable -> conservative default
        pass
    if vmem_cap <= (64 << 20):
        # v7x-class: 64 MiB VMEM, 3.2 TB/s HBM -> biggest tiles, capped footprint
        # (in + out double-buffered + fp32 temporaries stays well under 48 MiB).
        return 6 << 20, 48 << 20
    # v5e / v6e: 128 MiB physical VMEM, default scoped limit is much lower.
    return 4 << 20, 40 << 20


def _pick_tiles(batch, seqlen, row_bytes, target_bytes):
    """Pick (batch_tile, seq_tile) so one block holds ~target_bytes of activations."""
    per_batch = seqlen * row_bytes
    if per_batch <= target_bytes:
        tb = int(min(batch, max(1, target_bytes // per_batch)))
        # Keep >=2 grid steps when batch is even so the v7x megacore has a split.
        if tb >= batch and batch > 1 and batch % 2 == 0:
            tb = batch // 2
        return tb, seqlen
    ts = int(max(1, target_bytes // row_bytes))
    if ts < seqlen:
        ts = max(8, ts - (ts % 8))   # sublane-align the (ts, rot) table blocks
        ts = min(ts, seqlen)
    return 1, ts


# ---------------------------------------------------------------------------
# Kernel bodies.
# ---------------------------------------------------------------------------
def _rotate(x, c, s, out_dtype):
    """RoPE-rotate the first `rot` lanes of x (..., H, D); remaining lanes pass through.

    c / s: fp32 multiplier tables [cos, cos] / [-sin, sin], already reshaped so
    they broadcast against x's leading dims and head axis: (1, ts, 1, 1, rot).
    """
    rot = c.shape[-1]
    half = rot // 2
    d = x.shape[-1]
    xr = x[..., :rot].astype(jnp.float32)
    # Partner half-swap [x2, x1]: shifting by exactly half the rolled axis makes
    # the result independent of pltpu.roll's direction convention.
    if rot % 128 == 0:
        partner = pltpu.roll(xr, shift=half, axis=xr.ndim - 1)   # XLU lane rotate
    else:
        partner = jnp.concatenate([xr[..., half:], xr[..., :half]], axis=-1)
    y = (xr * c + partner * s).astype(out_dtype)
    if rot < d:
        # Exact copy of the pass-through tail (no *1 + *0 FMA -> keeps inf/NaN).
        y = jnp.concatenate([y, x[..., rot:].astype(out_dtype)], axis=-1)
    return y


def _bcast_tables(cos_ref, sin_ref):
    """(ts, rot) fp32 -> (1, ts, 1, 1, rot); hoisted once per grid step."""
    c = cos_ref[...]
    s = sin_ref[...]
    return c[None, :, None, None, :], s[None, :, None, None, :]


def _rope_slabs_kernel(x_ref, cos_ref, sin_ref, o_ref, *, n_rot):
    """x_ref/o_ref: (tb, ts, N, H, D).  Rotates slabs [0, n_rot); copies the rest."""
    c, s = _bcast_tables(cos_ref, sin_ref)
    n_slabs = x_ref.shape[2]
    for idx in range(n_slabs):                    # static python loop (N <= 3)
        slab = x_ref[:, :, idx:idx + 1]           # (tb, ts, 1, H, D)
        if idx < n_rot:
            o_ref[:, :, idx:idx + 1] = _rotate(slab, c, s, o_ref.dtype)
        else:
            o_ref[:, :, idx:idx + 1] = slab       # v passes through bit-exactly


def _rope_q_kv_kernel(q_ref, kv_ref, cos_ref, sin_ref, oq_ref, okv_ref):
    """Decode path: q (tb, ts, 1, H, D) and kv (tb, ts, 2, H, D) in one launch."""
    c, s = _bcast_tables(cos_ref, sin_ref)
    oq_ref[...] = _rotate(q_ref[...], c, s, oq_ref.dtype)
    okv_ref[:, :, 0:1] = _rotate(kv_ref[:, :, 0:1], c, s, okv_ref.dtype)
    okv_ref[:, :, 1:2] = kv_ref[:, :, 1:2]        # v passes through bit-exactly


# ---------------------------------------------------------------------------
# pallas_call wrappers.
# ---------------------------------------------------------------------------
def _apply_rope_slabs(x, mcos, msin, *, n_rot):
    """x: (B, S, N, H, D); rotates the first n_rot slabs of axis 2, copies the rest."""
    batch, seqlen, n_slabs, heads, head_dim = x.shape
    rot = mcos.shape[-1]
    target, vmem_limit = _vmem_budget()
    row_bytes = n_slabs * heads * head_dim * x.dtype.itemsize
    tb, ts = _pick_tiles(batch, seqlen, row_bytes, target)
    grid = (pl.cdiv(seqlen, ts), pl.cdiv(batch, tb))

    x_spec = pl.BlockSpec((tb, ts, n_slabs, heads, head_dim),
                          lambda si, bi: (bi, si, 0, 0, 0))
    t_spec = pl.BlockSpec((ts, rot), lambda si, bi: (si, 0))

    return pl.pallas_call(
        functools.partial(_rope_slabs_kernel, n_rot=n_rot),
        out_shape=jax.ShapeDtypeStruct(x.shape, x.dtype),
        grid=grid,
        in_specs=[x_spec, t_spec, t_spec],
        out_specs=x_spec,
        compiler_params=pltpu.CompilerParams(
            dimension_semantics=("parallel", "parallel"),
            vmem_limit_bytes=vmem_limit),
    )(x, mcos, msin)


def _apply_rope_q_kv(q, kv, mcos, msin):
    """Decode path: q (B, S, H, D) and kv (B, S, 2, H, D), fused into one launch."""
    batch, seqlen, heads, head_dim = q.shape
    assert kv.shape == (batch, seqlen, 2, heads, head_dim)
    rot = mcos.shape[-1]
    q5 = q.reshape(batch, seqlen, 1, heads, head_dim)    # metadata-only reshape

    target, vmem_limit = _vmem_budget()
    row_bytes = heads * head_dim * (q.dtype.itemsize + 2 * kv.dtype.itemsize)
    tb, ts = _pick_tiles(batch, seqlen, row_bytes, target)
    grid = (pl.cdiv(seqlen, ts), pl.cdiv(batch, tb))

    q_spec = pl.BlockSpec((tb, ts, 1, heads, head_dim),
                          lambda si, bi: (bi, si, 0, 0, 0))
    kv_spec = pl.BlockSpec((tb, ts, 2, heads, head_dim),
                           lambda si, bi: (bi, si, 0, 0, 0))
    t_spec = pl.BlockSpec((ts, rot), lambda si, bi: (si, 0))

    q_out, kv_out = pl.pallas_call(
        _rope_q_kv_kernel,
        out_shape=(jax.ShapeDtypeStruct(q5.shape, q.dtype),
                   jax.ShapeDtypeStruct(kv.shape, kv.dtype)),
        grid=grid,
        in_specs=[q_spec, kv_spec, t_spec, t_spec],
        out_specs=(q_spec, kv_spec),
        compiler_params=pltpu.CompilerParams(
            dimension_semantics=("parallel", "parallel"),
            vmem_limit_bytes=vmem_limit),
    )(q5, kv, mcos, msin)
    return q_out.reshape(batch, seqlen, heads, head_dim), kv_out


# ---------------------------------------------------------------------------
# Module-equivalent wrapper.
# ---------------------------------------------------------------------------
class RotaryEmbedding:
    """JAX/Pallas port of the PyTorch RotaryEmbedding module (scale_base=None)."""

    def __init__(self, dim, base=10000, scale_base=None, pos_idx_in_fp32=True, **kwargs):
        if scale_base is not None:
            # TODO(synk): xPos scale path; PyTorch reference also raises here.
            raise NotImplementedError("scale_base is not supported (matches reference).")
        self.dim = dim
        self.base = float(base)
        self.pos_idx_in_fp32 = pos_idx_in_fp32
        self.inv_freq = 1.0 / self.base ** (
            jnp.arange(0, dim, 2, dtype=jnp.float32) / dim)
        self._seq_len_cached = 0
        self._cos_cached = None      # (seqlen, dim // 2) float32
        self._sin_cached = None
        self._table_cache = {}       # (seqlen, offset) -> (mcos, msin)

    def _update_cos_sin_cache(self, seqlen):
        if seqlen > self._seq_len_cached or self._cos_cached is None:
            self._seq_len_cached = seqlen
            if self.pos_idx_in_fp32:
                t = jnp.arange(seqlen, dtype=jnp.float32)
            else:
                t = jnp.arange(seqlen, dtype=self.inv_freq.dtype)
            freqs = jnp.outer(t, self.inv_freq)
            # Angles kept in float32 end-to-end (no activation-dtype round trip).
            self._cos_cached = jnp.cos(freqs)
            self._sin_cached = jnp.sin(freqs)
            self._table_cache.clear()

    def _rope_tables(self, seqlen, seqlen_offset):
        """fp32 multiplier tables mcos=[cos, cos], msin=[-sin, sin], shape (S, rot)."""
        key = (seqlen, seqlen_offset)
        hit = self._table_cache.get(key)
        if hit is not None:
            return hit
        cos = self._cos_cached[seqlen_offset:seqlen_offset + seqlen]
        sin = self._sin_cached[seqlen_offset:seqlen_offset + seqlen]
        tables = (jnp.concatenate([cos, cos], axis=-1),
                  jnp.concatenate([-sin, sin], axis=-1))
        self._table_cache[key] = tables
        return tables

    def __call__(self, qkv, kv=None, seqlen_offset=0, max_seqlen=None):
        seqlen = qkv.shape[1]
        total = max_seqlen if max_seqlen is not None else seqlen + seqlen_offset
        self._update_cos_sin_cache(total)
        head_dim = qkv.shape[-1]
        assert 2 * (self.dim // 2) <= head_dim
        mcos, msin = self._rope_tables(seqlen, seqlen_offset)
        if kv is None:
            assert qkv.ndim == 5 and qkv.shape[2] == 3
            return _apply_rope_slabs(qkv, mcos, msin, n_rot=2)
        assert qkv.ndim == 4 and kv.ndim == 5 and kv.shape[2] == 2
        return _apply_rope_q_kv(qkv, kv, mcos, msin)


# ---------------------------------------------------------------------------
# Pure-JAX reference (mirrors the PyTorch _apply_rotary_emb semantics).
# ---------------------------------------------------------------------------
def _rotate_ref(x, cos, sin):
    """x: (B, S, H, D); cos/sin: (S, half) float32 (already offset-sliced)."""
    half = cos.shape[-1]
    rot = 2 * half
    x1 = x[..., :half].astype(jnp.float32)
    x2 = x[..., half:rot].astype(jnp.float32)
    c = cos.astype(jnp.float32)[None, :, None, :]
    s = sin.astype(jnp.float32)[None, :, None, :]
    x_rot = jnp.concatenate([x1 * c - x2 * s, x1 * s + x2 * c], axis=-1).astype(x.dtype)
    return jnp.concatenate([x_rot, x[..., rot:]], axis=-1)


if __name__ == "__main__":
    key = jax.random.PRNGKey(0)

    # 1) Fused qkv path, fp32, rotary_dim < head_dim (pass-through tail path).
    B, S, H, D, rdim = 2, 8, 4, 32, 16
    key, k1 = jax.random.split(key)
    qkv = jax.random.normal(k1, (B, S, 3, H, D), dtype=jnp.float32)
    rope = RotaryEmbedding(dim=rdim)
    rope._update_cos_sin_cache(S)
    cos, sin = rope._cos_cached[:S], rope._sin_cached[:S]
    v_in = qkv[:, :, 2]
    ref = jnp.stack([_rotate_ref(qkv[:, :, 0], cos, sin),
                     _rotate_ref(qkv[:, :, 1], cos, sin),
                     v_in], axis=2)
    out = jax.block_until_ready(rope(qkv))
    assert out.shape == qkv.shape and out.dtype == qkv.dtype
    assert jnp.allclose(out, ref, rtol=1e-5, atol=1e-5), "qkv fp32 mismatch"
    assert jnp.array_equal(out[:, :, 2], v_in), "v slice modified (fp32)"

    # 2) Fused qkv path, bf16, rotary_dim == head_dim == 128 (pltpu.roll path).
    B, S, H, D = 2, 8, 2, 128
    key, k2 = jax.random.split(key)
    qkv = jax.random.normal(k2, (B, S, 3, H, D), dtype=jnp.float32).astype(jnp.bfloat16)
    rope = RotaryEmbedding(dim=D)
    rope._update_cos_sin_cache(S)
    cos, sin = rope._cos_cached[:S], rope._sin_cached[:S]
    v_in = qkv[:, :, 2]
    ref = jnp.stack([_rotate_ref(qkv[:, :, 0], cos, sin),
                     _rotate_ref(qkv[:, :, 1], cos, sin),
                     v_in], axis=2)
    out = jax.block_until_ready(rope(qkv))
    assert out.dtype == jnp.bfloat16
    assert jnp.allclose(out.astype(jnp.float32), ref.astype(jnp.float32),
                        rtol=2e-2, atol=2e-2), "qkv bf16 mismatch"
    assert jnp.array_equal(out[:, :, 2], v_in), "v slice modified (bf16)"

    # 3) Separate q / kv decode path, fp32, with a sequence offset.
    B, S, H, D, rdim, off = 1, 8, 2, 64, 32, 2
    key, kq, kk = jax.random.split(key, 3)
    q = jax.random.normal(kq, (B, S, H, D), dtype=jnp.float32)
    kv = jax.random.normal(kk, (B, S, 2, H, D), dtype=jnp.float32)
    rope = RotaryEmbedding(dim=rdim)
    rope._update_cos_sin_cache(S + off)
    cos = rope._cos_cached[off:off + S]
    sin = rope._sin_cached[off:off + S]
    v_in = kv[:, :, 1]
    q_ref = _rotate_ref(q, cos, sin)
    kv_ref = jnp.stack([_rotate_ref(kv[:, :, 0], cos, sin), v_in], axis=2)
    q_out, kv_out = rope(q, kv=kv, seqlen_offset=off)
    q_out = jax.block_until_ready(q_out)
    kv_out = jax.block_until_ready(kv_out)
    assert jnp.allclose(q_out, q_ref, rtol=1e-5, atol=1e-5), "q mismatch (kv path)"
    assert jnp.allclose(kv_out, kv_ref, rtol=1e-5, atol=1e-5), "kv mismatch (kv path)"
    assert jnp.array_equal(kv_out[:, :, 1], v_in), "v slice modified (kv path)"

    print("KERNEL_OK")
</pallas_src>

<mosaic_0001>
module attributes {stable_mosaic.version = 11 : i64} {
  func.func @_rope_slabs_kernel(%arg0: i32, %arg1: i32, %arg2: memref<1x8x3x4x32xf32, #tpu.memory_space<vmem>>, %arg3: memref<8x16xf32, #tpu.memory_space<vmem>>, %arg4: memref<8x16xf32, #tpu.memory_space<vmem>>, %arg5: memref<1x8x3x4x32xf32, #tpu.memory_space<vmem>>) attributes {dimension_semantics = [#tpu.dimension_semantics<parallel>, #tpu.dimension_semantics<parallel>], iteration_bounds = array<i64: 1, 2>, scalar_prefetch = 0 : i64, scratch_operands = 0 : i64, tpu.core_type = #tpu.core_type<tc>, window_params = [{transform_indices = @transform_0, window_bounds = array<i64: 1, 8, 3, 4, 32>}, {transform_indices = @transform_1, window_bounds = array<i64: 8, 16>}, {transform_indices = @transform_2, window_bounds = array<i64: 8, 16>}, {transform_indices = @transform_3, window_bounds = array<i64: 1, 8, 3, 4, 32>}]} {
    %c0 = arith.constant 0 : index
    %c0_0 = arith.constant 0 : index
    %0 = vector.load %arg3[%c0, %c0_0] : memref<8x16xf32, #tpu.memory_space<vmem>>, vector<8x16xf32>
    %c0_1 = arith.constant 0 : index
    %c0_2 = arith.constant 0 : index
    %1 = vector.load %arg4[%c0_1, %c0_2] : memref<8x16xf32, #tpu.memory_space<vmem>>, vector<8x16xf32>
    %2 = vector.shape_cast %0 : vector<8x16xf32> to vector<1x8x1x1x16xf32>
    %3 = vector.shape_cast %1 : vector<8x16xf32> to vector<1x8x1x1x16xf32>
    %c0_3 = arith.constant 0 : index
    %c0_4 = arith.constant 0 : index
    %c0_5 = arith.constant 0 : index
    %c0_6 = arith.constant 0 : index
    %c0_7 = arith.constant 0 : index
    %4 = vector.load %arg2[%c0_3, %c0_4, %c0_5, %c0_6, %c0_7] : memref<1x8x3x4x32xf32, #tpu.memory_space<vmem>>, vector<1x8x1x4x32xf32>
    %5 = vector.extract_strided_slice %4 {offsets = [0, 0, 0, 0, 0], sizes = [1, 8, 1, 4, 16], strides = [1, 1, 1, 1, 1]} : vector<1x8x1x4x32xf32> to vector<1x8x1x4x16xf32>
    %6 = vector.extract_strided_slice %5 {offsets = [0, 0, 0, 0, 8], sizes = [1, 8, 1, 4, 8], strides = [1, 1, 1, 1, 1]} : vector<1x8x1x4x16xf32> to vector<1x8x1x4x8xf32>
    %7 = vector.extract_strided_slice %5 {offsets = [0, 0, 0, 0, 0], sizes = [1, 8, 1, 4, 8], strides = [1, 1, 1, 1, 1]} : vector<1x8x1x4x16xf32> to vector<1x8x1x4x8xf32>
    %8 = tpu.concatenate %6, %7 in 4 : vector<1x8x1x4x8xf32>, vector<1x8x1x4x8xf32> -> vector<1x8x1x4x16xf32>
    %9 = vector.broadcast %2 : vector<1x8x1x1x16xf32> to vector<1x8x1x4x16xf32>
    %10 = arith.mulf %5, %9 : vector<1x8x1x4x16xf32>
    %11 = vector.broadcast %3 : vector<1x8x1x1x16xf32> to vector<1x8x1x4x16xf32>
    %12 = arith.mulf %8, %11 : vector<1x8x1x4x16xf32>
    %13 = arith.addf %10, %12 : vector<1x8x1x4x16xf32>
    %14 = vector.extract_strided_slice %4 {offsets = [0, 0, 0, 0, 16], sizes = [1, 8, 1, 4, 16], strides = [1, 1, 1, 1, 1]} : vector<1x8x1x4x32xf32> to vector<1x8x1x4x16xf32>
    %15 = tpu.concatenate %13, %14 in 4 : vector<1x8x1x4x16xf32>, vector<1x8x1x4x16xf32> -> vector<1x8x1x4x32xf32>
    %c0_8 = arith.constant 0 : index
    %c0_9 = arith.constant 0 : index
    %c0_10 = arith.constant 0 : index
    %c0_11 = arith.constant 0 : index
    %c0_12 = arith.constant 0 : index
    %16 = vector.load %arg5[%c0_8, %c0_9, %c0_10, %c0_11, %c0_12] : memref<1x8x3x4x32xf32, #tpu.memory_space<vmem>>, vector<1x8x1x4x32xf32>
    tpu.vector_store %arg5[%c0_8, %c0_9, %c0_10, %c0_11, %c0_12], %15 {strides = array<i32>} : memref<1x8x3x4x32xf32, #tpu.memory_space<vmem>>, vector<1x8x1x4x32xf32>,
    %c0_13 = arith.constant 0 : index
    %c0_14 = arith.constant 0 : index
    %c1 = arith.constant 1 : index
    %c0_15 = arith.constant 0 : index
    %c0_16 = arith.constant 0 : index
    %17 = vector.load %arg2[%c0_13, %c0_14, %c1, %c0_15, %c0_16] : memref<1x8x3x4x32xf32, #tpu.memory_space<vmem>>, vector<1x8x1x4x32xf32>
    %18 = vector.extract_strided_slice %17 {offsets = [0, 0, 0, 0, 0], sizes = [1, 8, 1, 4, 16], strides = [1, 1, 1, 1, 1]} : vector<1x8x1x4x32xf32> to vector<1x8x1x4x16xf32>
    %19 = vector.extract_strided_slice %18 {offsets = [0, 0, 0, 0, 8], sizes = [1, 8, 1, 4, 8], strides = [1, 1, 1, 1, 1]} : vector<1x8x1x4x16xf32> to vector<1x8x1x4x8xf32>
    %20 = vector.extract_strided_slice %18 {offsets = [0, 0, 0, 0, 0], sizes = [1, 8, 1, 4, 8], strides = [1, 1, 1, 1, 1]} : vector<1x8x1x4x16xf32> to vector<1x8x1x4x8xf32>
    %21 = tpu.concatenate %19, %20 in 4 : vector<1x8x1x4x8xf32>, vector<1x8x1x4x8xf32> -> vector<1x8x1x4x16xf32>
    %22 = vector.broadcast %2 : vector<1x8x1x1x16xf32> to vector<1x8x1x4x16xf32>
    %23 = arith.mulf %18, %22 : vector<1x8x1x4x16xf32>
    %24 = vector.broadcast %3 : vector<1x8x1x1x16xf32> to vector<1x8x1x4x16xf32>
    %25 = arith.mulf %21, %24 : vector<1x8x1x4x16xf32>
    %26 = arith.addf %23, %25 : vector<1x8x1x4x16xf32>
    %27 = vector.extract_strided_slice %17 {offsets = [0, 0, 0, 0, 16], sizes = [1, 8, 1, 4, 16], strides = [1, 1, 1, 1, 1]} : vector<1x8x1x4x32xf32> to vector<1x8x1x4x16xf32>
    %28 = tpu.concatenate %26, %27 in 4 : vector<1x8x1x4x16xf32>, vector<1x8x1x4x16xf32> -> vector<1x8x1x4x32xf32>
    %c0_17 = arith.constant 0 : index
    %c0_18 = arith.constant 0 : index
    %c1_19 = arith.constant 1 : index
    %c0_20 = arith.constant 0 : index
    %c0_21 = arith.constant 0 : index
    %29 = vector.load %arg5[%c0_17, %c0_18, %c1_19, %c0_20, %c0_21] : memref<1x8x3x4x32xf32, #tpu.memory_space<vmem>>, vector<1x8x1x4x32xf32>
    tpu.vector_store %arg5[%c0_17, %c0_18, %c1_19, %c0_20, %c0_21], %28 {strides = array<i32>} : memref<1x8x3x4x32xf32, #tpu.memory_space<vmem>>, vector<1x8x1x4x32xf32>,
    %c0_22 = arith.constant 0 : index
    %c0_23 = arith.constant 0 : index
    %c2 = arith.constant 2 : index
    %c0_24 = arith.constant 0 : index
    %c0_25 = arith.constant 0 : index
    %30 = vector.load %arg2[%c0_22, %c0_23, %c2, %c0_24, %c0_25] : memref<1x8x3x4x32xf32, #tpu.memory_space<vmem>>, vector<1x8x1x4x32xf32>
    %c0_26 = arith.constant 0 : index
    %c0_27 = arith.constant 0 : index
    %c2_28 = arith.constant 2 : index
    %c0_29 = arith.constant 0 : index
    %c0_30 = arith.constant 0 : index
    %31 = vector.load %arg5[%c0_26, %c0_27, %c2_28, %c0_29, %c0_30] : memref<1x8x3x4x32xf32, #tpu.memory_space<vmem>>, vector<1x8x1x4x32xf32>
    tpu.vector_store %arg5[%c0_26, %c0_27, %c2_28, %c0_29, %c0_30], %30 {strides = array<i32>} : memref<1x8x3x4x32xf32, #tpu.memory_space<vmem>>, vector<1x8x1x4x32xf32>,
    return
  }
  func.func @transform_0(%arg0: i32, %arg1: i32) -> (i32, i32, i32, i32, i32) {
    %c0_i32 = arith.constant 0 : i32
    %c0_i32_0 = arith.constant 0 : i32
    %c0_i32_1 = arith.constant 0 : i32
    %c0_i32_2 = arith.constant 0 : i32
    return %arg1, %arg0, %c0_i32, %c0_i32_0, %c0_i32_1 : i32, i32, i32, i32, i32
  }
  func.func @transform_1(%arg0: i32, %arg1: i32) -> (i32, i32) {
    %c0_i32 = arith.constant 0 : i32
    %c0_i32_0 = arith.constant 0 : i32
    return %arg0, %c0_i32 : i32, i32
  }
  func.func @transform_2(%arg0: i32, %arg1: i32) -> (i32, i32) {
    %c0_i32 = arith.constant 0 : i32
    %c0_i32_0 = arith.constant 0 : i32
    return %arg0, %c0_i32 : i32, i32
  }
  func.func @transform_3(%arg0: i32, %arg1: i32) -> (i32, i32, i32, i32, i32) {
    %c0_i32 = arith.constant 0 : i32
    %c0_i32_0 = arith.constant 0 : i32
    %c0_i32_1 = arith.constant 0 : i32
    %c0_i32_2 = arith.constant 0 : i32
    return %arg1, %arg0, %c0_i32, %c0_i32_0, %c0_i32_1 : i32, i32, i32, i32, i32
  }
}

</mosaic_0001>

<llo_original>
// kernel: tpu_custom_call.1
$region0: #{tpu_custom_call.1}
  #allocation0 [shape = 'u32[]', space=smem, size = 0x4, offset = 0x4, fixed_abs, tag = 'smem constant byte address 0x4 - core index']
  #allocation1 [shape = 'u32[144,128]{1,0:T(1,128)}', space=vmem, size = 0x12000, scoped, tag = 'internal scratch']
  %s0 = inlined_call_operand.hbm [shape: f32[2,8,3,4,32], index: 0, kind: input, shape index: {}]
  %s1 = inlined_call_operand.hbm [shape: f32[8,16], index: 1, kind: input, shape index: {}]
  %s2 = inlined_call_operand.hbm [shape: f32[8,16], index: 2, kind: input, shape index: {}]
  %s3 = inlined_call_operand.hbm [shape: f32[2,8,3,4,32], index: 3, kind: output, shape index: {}]
  %s4 = sld [smem:[#allocation0]]
  $region57: #{tpu_custom_call.1} parent=0
    _
  %s6 = ssub.s32 1, %s4
  %s7 = scalar_select 0, %s6, %s4
  $region1: #{tpu_custom_call.1} parent=0
    #allocation2 [shape = 'u8[98304]{0}', space=vmem, size = 0x18000, scoped, tag = 'input window, operand 0']
    #allocation3 [shape = 's32[2]{0}', space=sflag, size = 0x8, scoped, tag = 'scoped memory for tpu_custom_call.1']
    #allocation4 [shape = 's32[2]{0}', space=sflag, size = 0x8, scoped, tag = 'scoped memory for tpu_custom_call.1']
    #allocation5 [shape = 'u8[4096]{0}', space=vmem, size = 0x1000, scoped, tag = 'input window, operand 1, single buffered']
    #allocation6 [shape = 's32[1]{0}', space=sflag, size = 0x4, scoped, tag = 'scoped memory for tpu_custom_call.1']
    #allocation7 [shape = 'u8[4096]{0}', space=vmem, size = 0x1000, scoped, tag = 'input window, operand 2, single buffered']
    #allocation8 [shape = 'u8[98304]{0}', space=vmem, size = 0x18000, scoped, tag = 'output window, operand 0']
    %8 = vsyncpa [#allocation3], 0
    %s9 = scalar_lea.sflag [#allocation3], 1
    %10 = vsyncpa %s9, 0
    %11 = vsyncpa [#allocation6], 0
    %12 = vsyncpa [#allocation4], 0
    %s13 = scalar_lea.sflag [#allocation4], 1
    %14 = vsyncpa %s13, 0
    loop: start=0, step=1, limit=4
    $region2: #{tpu_custom_call.1} parent=1 // loop_pre_header
      _
    $region3: #{tpu_custom_call.1} parent=1 // loop_header
      %s16 = sphi 0, %s20
      %p17 = scmp.ge.s32.totalorder %s16, 4
      %s23 = sphi 0, %s35
      %s24 = sphi 0, %s31
      %s25 = sphi 0, %s23
      %s26 = sphi 0, %s24
      %s27 = sphi 0, %s25
      %s28 = sphi 0, %s26
      %s40 = sphi 0, %s42
      %s43 = sphi 0, %s40
      %s44 = sphi 0, %s43
      %s60 = sphi 0, %s44
      %s66 = sphi 0, %s68
      %s69 = sphi 0, %s66
      %s70 = sphi 0, %s69
      %s86 = sphi 0, %s70
      %s92 = sphi 0, %s94
      %s95 = sphi 0, %s92
      %s96 = sphi 0, %s95
      %s112 = sphi 0, %s96
      %s120 = sphi 0, %s122
      %s123 = sphi 0, %s120
      %s124 = sphi 0, %s123
      %s140 = sphi 0, %s124
    $region4: #{tpu_custom_call.1} parent=1 // loop_header_branch
      %19 = sbr.rel (%p17) target = $region8
    $region5: #{tpu_custom_call.1} parent=1 // loop_body
      %s21 = ssub.s32 %s16, 1
      %s22 = ssub.s32 %s16, 2
      %s29 = sadd.s32 1, %s24
      %p30 = scmp.ge.s32.totalorder %s29, 2
      %s31 = scalar_select %p30, 0, %s29
      %s32 = sadd.s32 1, %s23
      %s33 = scalar_select %p30, %s32, %s23
      %p34 = scmp.ge.s32.totalorder %s33, 1
      %s35 = scalar_select %p34, 0, %s33
      %s36 = ssub.s32 %s24, %s31
      %s37 = ssub.s32 %s23, %s35
      %s38 = sor.u32 %s36, %s37
      %p39 = scmp.eq.s32.totalorder %s38, 0
      %s41 = sadd.s32 %s40, 1
      %s42 = scalar_select %p39, %s40, %s41
      %p45 = pneg %p39
      %p46 = scmp.eq.s32.totalorder %s16, 1
      %p47 = por %p45, %p46
      %p48 = scmp.ne.s32.totalorder %s40, %s43
      %p49 = scmp.eq.s32.totalorder %s16, 0
      %p50 = por %p48, %p49
      %p51 = scmp.ne.s32.totalorder %s40, %s43
      %p52 = scmp.eq.s32.totalorder %s21, 1
      %p53 = por %p51, %p52
      %p54 = scmp.ne.s32.totalorder %s43, %s44
      %p55 = scmp.eq.s32.totalorder %s21, 0
      %p56 = por %p54, %p55
      %p57 = scmp.ne.s32.totalorder %s43, %s44
      %p58 = scmp.eq.s32.totalorder %s22, 1
      %p59 = por %p57, %p58
      %p61 = scmp.ne.s32.totalorder %s44, %s60
      %p62 = scmp.eq.s32.totalorder %s22, 0
      %p63 = por %p61, %p62
      %s64 = ssub.s32 %s23, %s35
      %p65 = scmp.eq.s32.totalorder %s64, 0
      %s67 = sadd.s32 %s66, 1
      %s68 = scalar_select %p65, %s66, %s67
      %p71 = pneg %p65
      %p72 = scmp.eq.s32.totalorder %s16, 1
      %p73 = por %p71, %p72
      %p74 = scmp.ne.s32.totalorder %s66, %s69
      %p75 = scmp.eq.s32.totalorder %s16, 0
      %p76 = por %p74, %p75
      %p77 = scmp.ne.s32.totalorder %s66, %s69
      %p78 = scmp.eq.s32.totalorder %s21, 1
      %p79 = por %p77, %p78
      %p80 = scmp.ne.s32.totalorder %s69, %s70
      %p81 = scmp.eq.s32.totalorder %s21, 0
      %p82 = por %p80, %p81
      %p83 = scmp.ne.s32.totalorder %s69, %s70
      %p84 = scmp.eq.s32.totalorder %s22, 1
      %p85 = por %p83, %p84
      %p87 = scmp.ne.s32.totalorder %s70, %s86
      %p88 = scmp.eq.s32.totalorder %s22, 0
      %p89 = por %p87, %p88
      %s90 = ssub.s32 %s23, %s35
      %p91 = scmp.eq.s32.totalorder %s90, 0
      %s93 = sadd.s32 %s92, 1
      %s94 = scalar_select %p91, %s92, %s93
      %p97 = pneg %p91
      %p98 = scmp.eq.s32.totalorder %s16, 1
      %p99 = por %p97, %p98
      %p100 = scmp.ne.s32.totalorder %s92, %s95
      %p101 = scmp.eq.s32.totalorder %s16, 0
      %p102 = por %p100, %p101
      %p103 = scmp.ne.s32.totalorder %s92, %s95
      %p104 = scmp.eq.s32.totalorder %s21, 1
      %p105 = por %p103, %p104
      %p106 = scmp.ne.s32.totalorder %s95, %s96
      %p107 = scmp.eq.s32.totalorder %s21, 0
      %p108 = por %p106, %p107
      %p109 = scmp.ne.s32.totalorder %s95, %s96
      %p110 = scmp.eq.s32.totalorder %s22, 1
      %p111 = por %p109, %p110
      %p113 = scmp.ne.s32.totalorder %s96, %s112
      %p114 = scmp.eq.s32.totalorder %s22, 0
      %p115 = por %p113, %p114
      %s116 = ssub.s32 %s24, %s31
      %s117 = ssub.s32 %s23, %s35
      %s118 = sor.u32 %s116, %s117
      %p119 = scmp.eq.s32.totalorder %s118, 0
      %s121 = sadd.s32 %s120, 1
      %s122 = scalar_select %p119, %s120, %s121
      %p125 = pneg %p119
      %p126 = scmp.eq.s32.totalorder %s16, 1
      %p127 = por %p125, %p126
      %p128 = scmp.ne.s32.totalorder %s120, %s123
      %p129 = scmp.eq.s32.totalorder %s16, 0
      %p130 = por %p128, %p129
      %p131 = scmp.ne.s32.totalorder %s120, %s123
      %p132 = scmp.eq.s32.totalorder %s21, 1
      %p133 = por %p131, %p132
      %p134 = scmp.ne.s32.totalorder %s123, %s124
      %p135 = scmp.eq.s32.totalorder %s21, 0
      %p136 = por %p134, %p135
      %p137 = scmp.ne.s32.totalorder %s123, %s124
      %p138 = scmp.eq.s32.totalorder %s22, 1
      %p139 = por %p137, %p138
      %p141 = scmp.ne.s32.totalorder %s124, %s140
      %p142 = scmp.eq.s32.totalorder %s22, 0
      %p143 = por %p141, %p142
      %p144 = scmp.le.s32.totalorder 1, %s16
      %p145 = scmp.lt.s32.totalorder %s16, 3
      %p146 = pnand %p144, %p145
      %p147 = pneg %p146
      // Predicated region
      $region9: #{tpu_custom_call.1} parent=5 // pred_check
        _
      $region10: #{tpu_custom_call.1} parent=5 // pred_check_branch
        %149 = sbr.rel (%p146) target = $region12
      $region11: #{tpu_custom_call.1} parent=5 // pred_region
        %s150 = ssub.s32 %s16, 1
        // Predicated region
        $region13: #{tpu_custom_call.1} parent=11 // pred_check
          %p151 = pneg %p82
        $region14: #{tpu_custom_call.1} parent=11 // pred_check_branch
          %153 = sbr.rel (%p151) target = $region16
        $region15: #{tpu_custom_call.1} parent=11 // pred_region
          %s155 = ssub.s32 128, 128
          %156 = vsyncadd [#allocation6], %s155
          %s157 = smul.addr %s25, 128
          %s158 = scalar_lea.hbm %s1, %s157
          %s160 = sshll.u32 [#allocation5], 4
          %s161 = int_to_ptr.vmem [resolvable:$true] %s160
          %163 = dma.hbm_to_vmem [thread:$0]  %s158, 128, %s161, [#allocation6]
        $region16: #{tpu_custom_call.1} parent=11 // pred_fallthru
          _
        // Predicated region
        $region17: #{tpu_custom_call.1} parent=11 // pred_check
          %p164 = pneg %p108
        $region18: #{tpu_custom_call.1} parent=11 // pred_check_branch
          %166 = sbr.rel (%p164) target = $region20
        $region19: #{tpu_custom_call.1} parent=11 // pred_region
          %s168 = ssub.s32 128, 128
          %169 = vsyncadd [#allocation6], %s168
          %s170 = smul.addr %s25, 128
          %s171 = scalar_lea.hbm %s2, %s170
          %s173 = sshll.u32 [#allocation7], 4
          %s174 = int_to_ptr.vmem [resolvable:$true] %s173
          %176 = dma.hbm_to_vmem [thread:$0]  %s171, 128, %s174, [#allocation6]
        $region20: #{tpu_custom_call.1} parent=11 // pred_fallthru
          _
      $region12: #{tpu_custom_call.1} parent=5 // pred_fallthru
        _
      %p177 = scmp.lt.s32.totalorder %s16, 2
      // Predicated region
      $region21: #{tpu_custom_call.1} parent=5 // pred_check
        %p178 = pneg %p177
      $region22: #{tpu_custom_call.1} parent=5 // pred_check_branch
        %180 = sbr.rel (%p178) target = $region24
      $region23: #{tpu_custom_call.1} parent=5 // pred_region
        // Predicated region
        $region25: #{tpu_custom_call.1} parent=23 // pred_check
          %p181 = pneg %p50
        $region26: #{tpu_custom_call.1} parent=23 // pred_check_branch
          %183 = sbr.rel (%p181) target = $region28
        $region27: #{tpu_custom_call.1} parent=23 // pred_region
          %s184 = sand.u32 %s40, 1
          %s185 = scalar_lea.sflag [#allocation3], %s184
          %s186 = sand.u32 %s40, 1
          %s187 = smul.addr %s186, 96
          %s188 = scalar_lea.vmem [#allocation2], %s187
          %s189 = smul.u32 8, %s23
          %s191 = ssub.s32 1536, 1536
          %192 = vsyncadd %s185, %s191
          %s193 = smul.addr %s189, 3
          %s194 = smul.addr %s24, 24
          %s195 = sadd.s32 %s193, %s194
          %s196 = smul.addr %s195, 64
          %s197 = scalar_lea.hbm %s0, %s196
          %s198 = sshll.u32 %s188, 4
          %s199 = int_to_ptr.vmem [resolvable:$true] %s198
          %204 = dma.hbm_to_vmem [thread:$0]  %s197, 1536, %s199, %s185, 64, 64, 4
        $region28: #{tpu_custom_call.1} parent=23 // pred_fallthru
          _
      $region24: #{tpu_custom_call.1} parent=5 // pred_fallthru
        _
      %p205 = scmp.le.s32.totalorder 1, %s16
      %p206 = scmp.lt.s32.totalorder %s16, 3
      %p207 = pnand %p205, %p206
      %p208 = pneg %p207
      // Predicated region
      $region29: #{tpu_custom_call.1} parent=5 // pred_check
        _
      $region30: #{tpu_custom_call.1} parent=5 // pred_check_branch
        %210 = sbr.rel (%p207) target = $region32
      $region31: #{tpu_custom_call.1} parent=5 // pred_region
        %s211 = ssub.s32 %s16, 1
        %s212 = sand.u32 %s43, 1
        %s213 = scalar_lea.sflag [#allocation3], %s212
        %s214 = sand.u32 %s43, 1
        %s215 = smul.addr %s214, 96
        %s216 = scalar_lea.vmem [#allocation2], %s215
        // Predicated region
        $region33: #{tpu_custom_call.1} parent=31 // pred_check
          %p217 = pneg %p56
        $region34: #{tpu_custom_call.1} parent=31 // pred_check_branch
          %219 = sbr.rel (%p217) target = $region36
        $region35: #{tpu_custom_call.1} parent=31 // pred_region
          %220 = dma.done %s213, 1536
        $region36: #{tpu_custom_call.1} parent=31 // pred_fallthru
          _
        // Predicated region
        $region37: #{tpu_custom_call.1} parent=31 // pred_check
          %p221 = pneg %p82
        $region38: #{tpu_custom_call.1} parent=31 // pred_check_branch
          %223 = sbr.rel (%p221) target = $region40
        $region39: #{tpu_custom_call.1} parent=31 // pred_region
          %224 = dma.done [#allocation6], 128
        $region40: #{tpu_custom_call.1} parent=31 // pred_fallthru
          _
        // Predicated region
        $region41: #{tpu_custom_call.1} parent=31 // pred_check
          %p225 = pneg %p108
        $region42: #{tpu_custom_call.1} parent=31 // pred_check_branch
          %227 = sbr.rel (%p225) target = $region44
        $region43: #{tpu_custom_call.1} parent=31 // pred_region
          %228 = dma.done [#allocation6], 128
        $region44: #{tpu_custom_call.1} parent=31 // pred_fallthru
          _
        %s229 = sand.u32 %s43, 1
        %s230 = scalar_lea.sflag [#allocation3], %s229
        %s231 = sand.u32 %s43, 1
        %s232 = smul.addr %s231, 96
        %s233 = scalar_lea.vmem [#allocation2], %s232
        %p234 = pneg %p56
        %p235 = pneg %p53
        %p236 = pneg %p82
        %p237 = pneg %p79
        %p238 = pneg %p108
        %p239 = pneg %p105
        %p240 = pneg %p136
        %p241 = pneg %p133
        %s242 = sand.u32 %s123, 1
        %s243 = scalar_lea.sflag [#allocation4], %s242
        %s244 = sand.u32 %s123, 1
        %s245 = smul.addr %s244, 96
        %s246 = scalar_lea.vmem [#allocation8], %s245
        %s247 = smul.u32 8, %s25
        %s248 = smul.u32 8, %s25
        %v249 = vld [vmem:[#allocation5] sm:$0xff]
        %v250 = vld [vmem:[#allocation7] sm:$0xff]
        %v252 = vcombine.high %v249, %v249
        %v254 = vunpack.c.l.s4 1966171168
        %v255 = vunpack.c.0.s8 %v254
        %v256 = vlaneseq
        %v257 = vshrl.u32 %v256, 7
        %v258 = vsub.s32 %v255, %v257
        %v259 = vrot.slane %v249, %v258
        %v261 = vunpack.c.l.s4 1966171168
        %v262 = vunpack.c.0.s8 %v261
        %v263 = vlaneseq
        %v264 = vshrl.u32 %v263, 7
        %v265 = vsub.s32 %v262, %v264
        %v266 = vrot.slane %v252, %v265
        %v267 = vcombine.high %v259, %v259
        %v268 = vcombine.high %v266, %v266
        %v270 = vunpack.c.l.s4 1966171168
        %v271 = vunpack.c.0.s8 %v270
        %v272 = vlaneseq
        %v273 = vshrl.u32 %v272, 7
        %v274 = vsub.s32 %v271, %v273
        %v275 = vrot.slane %v259, %v274
        %v277 = vunpack.c.l.s4 1966171168
        %v278 = vunpack.c.0.s8 %v277
        %v279 = vlaneseq
        %v280 = vshrl.u32 %v279, 7
        %v281 = vsub.s32 %v278, %v280
        %v282 = vrot.slane %v266, %v281
        %v284 = vunpack.c.l.s4 1966171168
        %v285 = vunpack.c.0.s8 %v284
        %v286 = vlaneseq
        %v287 = vshrl.u32 %v286, 7
        %v288 = vsub.s32 %v285, %v287
        %v289 = vrot.slane %v267, %v288
        %v291 = vunpack.c.l.s4 1966171168
        %v292 = vunpack.c.0.s8 %v291
        %v293 = vlaneseq
        %v294 = vshrl.u32 %v293, 7
        %v295 = vsub.s32 %v292, %v294
        %v296 = vrot.slane %v268, %v295
        %v297 = vcombine.high %v275, %v275
        %v298 = vcombine.high %v282, %v282
        %v299 = vcombine.high %v289, %v289
        %v300 = vcombine.high %v296, %v296
        %v302 = vcombine.high %v250, %v250
        %v304 = vunpack.c.l.s4 1966171168
        %v305 = vunpack.c.0.s8 %v304
        %v306 = vlaneseq
        %v307 = vshrl.u32 %v306, 7
        %v308 = vsub.s32 %v305, %v307
        %v309 = vrot.slane %v250, %v308
        %v311 = vunpack.c.l.s4 1966171168
        %v312 = vunpack.c.0.s8 %v311
        %v313 = vlaneseq
        %v314 = vshrl.u32 %v313, 7
        %v315 = vsub.s32 %v312, %v314
        %v316 = vrot.slane %v302, %v315
        %v317 = vcombine.high %v309, %v309
        %v318 = vcombine.high %v316, %v316
        %v320 = vunpack.c.l.s4 1966171168
        %v321 = vunpack.c.0.s8 %v320
        %v322 = vlaneseq
        %v323 = vshrl.u32 %v322, 7
        %v324 = vsub.s32 %v321, %v323
        %v325 = vrot.slane %v309, %v324
        %v327 = vunpack.c.l.s4 1966171168
        %v328 = vunpack.c.0.s8 %v327
        %v329 = vlaneseq
        %v330 = vshrl.u32 %v329, 7
        %v331 = vsub.s32 %v328, %v330
        %v332 = vrot.slane %v316, %v331
        %v334 = vunpack.c.l.s4 1966171168
        %v335 = vunpack.c.0.s8 %v334
        %v336 = vlaneseq
        %v337 = vshrl.u32 %v336, 7
        %v338 = vsub.s32 %v335, %v337
        %v339 = vrot.slane %v317, %v338
        %v341 = vunpack.c.l.s4 1966171168
        %v342 = vunpack.c.0.s8 %v341
        %v343 = vlaneseq
        %v344 = vshrl.u32 %v343, 7
        %v345 = vsub.s32 %v342, %v344
        %v346 = vrot.slane %v318, %v345
        %v347 = vcombine.high %v325, %v325
        %v348 = vcombine.high %v332, %v332
        %v349 = vcombine.high %v339, %v339
        %v350 = vcombine.high %v346, %v346
        %v351 = vld [vmem:[%s216] sm:$0xf]
        %v352 = vld [vmem:[%s216 + $0xc] sm:$0xf]
        %v353 = vld [vmem:[%s216 + $0x18] sm:$0xf]
        %v354 = vld [vmem:[%s216 + $0x24] sm:$0xf]
        %v355 = vld [vmem:[%s216 + $0x30] sm:$0xf]
        %v356 = vld [vmem:[%s216 + $0x3c] sm:$0xf]
        %v357 = vld [vmem:[%s216 + $0x48] sm:$0xf]
        %v358 = vld [vmem:[%s216 + $0x54] sm:$0xf]
        %367 = vrot.lane.b32.xlu0 %v351, 120
        %v368 = vpop.permute.xlu0 %367
        %369 = vrot.lane.b32.xlu0 %v352, 120
        %v370 = vpop.permute.xlu0 %369
        %371 = vrot.lane.b32.xlu0 %v353, 120
        %v372 = vpop.permute.xlu0 %371
        %373 = vrot.lane.b32.xlu0 %v354, 120
        %v374 = vpop.permute.xlu0 %373
        %375 = vrot.lane.b32.xlu0 %v355, 120
        %v376 = vpop.permute.xlu0 %375
        %377 = vrot.lane.b32.xlu0 %v356, 120
        %v378 = vpop.permute.xlu0 %377
        %379 = vrot.lane.b32.xlu0 %v357, 120
        %v380 = vpop.permute.xlu0 %379
        %381 = vrot.lane.b32.xlu0 %v358, 120
        %v382 = vpop.permute.xlu0 %381
        %391 = vrot.lane.b32.xlu0 %v351, 8
        %v392 = vpop.permute.xlu0 %391
        %393 = vrot.lane.b32.xlu0 %v352, 8
        %v394 = vpop.permute.xlu0 %393
        %395 = vrot.lane.b32.xlu0 %v353, 8
        %v396 = vpop.permute.xlu0 %395
        %397 = vrot.lane.b32.xlu0 %v354, 8
        %v398 = vpop.permute.xlu0 %397
        %399 = vrot.lane.b32.xlu0 %v355, 8
        %v400 = vpop.permute.xlu0 %399
        %401 = vrot.lane.b32.xlu0 %v356, 8
        %v402 = vpop.permute.xlu0 %401
        %403 = vrot.lane.b32.xlu0 %v357, 8
        %v404 = vpop.permute.xlu0 %403
        %405 = vrot.lane.b32.xlu0 %v358, 8
        %v406 = vpop.permute.xlu0 %405
        %vm415 = vcmask 64512
        %v416 = vsel %vm415, %v368, %v392
        %v417 = vsel %vm415, %v370, %v394
        %v418 = vsel %vm415, %v372, %v396
        %v419 = vsel %vm415, %v374, %v398
        %v420 = vsel %vm415, %v376, %v400
        %v421 = vsel %vm415, %v378, %v402
        %v422 = vsel %vm415, %v380, %v404
        %v423 = vsel %vm415, %v382, %v406
        %v424 = vlaneseq
        %v425 = vshrl.u32 %v424, 7
        %v426 = vsub.s32 0, %v425
        %v427 = vrot.slane %v275, %v426
        %v428 = vlaneseq
        %v429 = vshrl.u32 %v428, 7
        %v430 = vsub.s32 0, %v429
        %v431 = vrot.slane %v289, %v430
        %v432 = vlaneseq
        %v433 = vshrl.u32 %v432, 7
        %v434 = vsub.s32 0, %v433
        %v435 = vrot.slane %v297, %v434
        %v436 = vlaneseq
        %v437 = vshrl.u32 %v436, 7
        %v438 = vsub.s32 0, %v437
        %v439 = vrot.slane %v299, %v438
        %v440 = vlaneseq
        %v441 = vshrl.u32 %v440, 7
        %v442 = vsub.s32 0, %v441
        %v443 = vrot.slane %v282, %v442
        %v444 = vlaneseq
        %v445 = vshrl.u32 %v444, 7
        %v446 = vsub.s32 0, %v445
        %v447 = vrot.slane %v296, %v446
        %v448 = vlaneseq
        %v449 = vshrl.u32 %v448, 7
        %v450 = vsub.s32 0, %v449
        %v451 = vrot.slane %v298, %v450
        %v452 = vlaneseq
        %v453 = vshrl.u32 %v452, 7
        %v454 = vsub.s32 0, %v453
        %v455 = vrot.slane %v300, %v454
        %v464 = vmul.f32 %v351, %v427
        %v465 = vmul.f32 %v352, %v431
        %v466 = vmul.f32 %v353, %v435
        %v467 = vmul.f32 %v354, %v439
        %v468 = vmul.f32 %v355, %v443
        %v469 = vmul.f32 %v356, %v447
        %v470 = vmul.f32 %v357, %v451
        %v471 = vmul.f32 %v358, %v455
        %v472 = vlaneseq
        %v473 = vshrl.u32 %v472, 7
        %v474 = vsub.s32 0, %v473
        %v475 = vrot.slane %v325, %v474
        %v476 = vlaneseq
        %v477 = vshrl.u32 %v476, 7
        %v478 = vsub.s32 0, %v477
        %v479 = vrot.slane %v339, %v478
        %v480 = vlaneseq
        %v481 = vshrl.u32 %v480, 7
        %v482 = vsub.s32 0, %v481
        %v483 = vrot.slane %v347, %v482
        %v484 = vlaneseq
        %v485 = vshrl.u32 %v484, 7
        %v486 = vsub.s32 0, %v485
        %v487 = vrot.slane %v349, %v486
        %v488 = vlaneseq
        %v489 = vshrl.u32 %v488, 7
        %v490 = vsub.s32 0, %v489
        %v491 = vrot.slane %v332, %v490
        %v492 = vlaneseq
        %v493 = vshrl.u32 %v492, 7
        %v494 = vsub.s32 0, %v493
        %v495 = vrot.slane %v346, %v494
        %v496 = vlaneseq
        %v497 = vshrl.u32 %v496, 7
        %v498 = vsub.s32 0, %v497
        %v499 = vrot.slane %v348, %v498
        %v500 = vlaneseq
        %v501 = vshrl.u32 %v500, 7
        %v502 = vsub.s32 0, %v501
        %v503 = vrot.slane %v350, %v502
        %v512 = vmul.f32 %v416, %v475
        %v513 = vmul.f32 %v417, %v479
        %v514 = vmul.f32 %v418, %v483
        %v515 = vmul.f32 %v419, %v487
        %v516 = vmul.f32 %v420, %v491
        %v517 = vmul.f32 %v421, %v495
        %v518 = vmul.f32 %v422, %v499
        %v519 = vmul.f32 %v423, %v503
        %v520 = vadd.f32 %v464, %v512
        %v521 = vadd.f32 %v465, %v513
        %v522 = vadd.f32 %v466, %v514
        %v523 = vadd.f32 %v467, %v515
        %v524 = vadd.f32 %v468, %v516
        %v525 = vadd.f32 %v469, %v517
        %v526 = vadd.f32 %v470, %v518
        %v527 = vadd.f32 %v471, %v519
        %vm528 = vcmask 130048
        %v529 = vsel %vm528, %v520, %v351
        %v530 = vsel %vm528, %v521, %v352
        %v531 = vsel %vm528, %v522, %v353
        %v532 = vsel %vm528, %v523, %v354
        %v533 = vsel %vm528, %v524, %v355
        %v534 = vsel %vm528, %v525, %v356
        %v535 = vsel %vm528, %v526, %v357
        %v536 = vsel %vm528, %v527, %v358
        %vm537 = vcmask 257024
        %538 = vst.msk [vmem:[%s246] sm:$0xf] %vm537, %v529
        %539 = vst.msk [vmem:[%s246 + $0xc] sm:$0xf] %vm537, %v530
        %540 = vst.msk [vmem:[%s246 + $0x18] sm:$0xf] %vm537, %v531
        %541 = vst.msk [vmem:[%s246 + $0x24] sm:$0xf] %vm537, %v532
        %542 = vst.msk [vmem:[%s246 + $0x30] sm:$0xf] %vm537, %v533
        %543 = vst.msk [vmem:[%s246 + $0x3c] sm:$0xf] %vm537, %v534
        %544 = vst.msk [vmem:[%s246 + $0x48] sm:$0xf] %vm537, %v535
        %545 = vst.msk [vmem:[%s246 + $0x54] sm:$0xf] %vm537, %v536
        %s546 = scalar_lea.vmem %s216, 4 [#allocation2]
        %v547 = vld [vmem:[%s546] sm:$0xf]
        %v548 = vld [vmem:[%s546 + $0xc] sm:$0xf]
        %v549 = vld [vmem:[%s546 + $0x18] sm:$0xf]
        %v550 = vld [vmem:[%s546 + $0x24] sm:$0xf]
        %v551 = vld [vmem:[%s546 + $0x30] sm:$0xf]
        %v552 = vld [vmem:[%s546 + $0x3c] sm:$0xf]
        %v553 = vld [vmem:[%s546 + $0x48] sm:$0xf]
        %v554 = vld [vmem:[%s546 + $0x54] sm:$0xf]
        %563 = vrot.lane.b32.xlu0 %v547, 120
        %v564 = vpop.permute.xlu0 %563
        %565 = vrot.lane.b32.xlu0 %v548, 120
        %v566 = vpop.permute.xlu0 %565
        %567 = vrot.lane.b32.xlu0 %v549, 120
        %v568 = vpop.permute.xlu0 %567
        %569 = vrot.lane.b32.xlu0 %v550, 120
        %v570 = vpop.permute.xlu0 %569
        %571 = vrot.lane.b32.xlu0 %v551, 120
        %v572 = vpop.permute.xlu0 %571
        %573 = vrot.lane.b32.xlu0 %v552, 120
        %v574 = vpop.permute.xlu0 %573
        %575 = vrot.lane.b32.xlu0 %v553, 120
        %v576 = vpop.permute.xlu0 %575
        %577 = vrot.lane.b32.xlu0 %v554, 120
        %v578 = vpop.permute.xlu0 %577
        %587 = vrot.lane.b32.xlu0 %v547, 8
        %v588 = vpop.permute.xlu0 %587
        %589 = vrot.lane.b32.xlu0 %v548, 8
        %v590 = vpop.permute.xlu0 %589
        %591 = vrot.lane.b32.xlu0 %v549, 8
        %v592 = vpop.permute.xlu0 %591
        %593 = vrot.lane.b32.xlu0 %v550, 8
        %v594 = vpop.permute.xlu0 %593
        %595 = vrot.lane.b32.xlu0 %v551, 8
        %v596 = vpop.permute.xlu0 %595
        %597 = vrot.lane.b32.xlu0 %v552, 8
        %v598 = vpop.permute.xlu0 %597
        %599 = vrot.lane.b32.xlu0 %v553, 8
        %v600 = vpop.permute.xlu0 %599
        %601 = vrot.lane.b32.xlu0 %v554, 8
        %v602 = vpop.permute.xlu0 %601
        %v611 = vsel %vm415, %v564, %v588
        %v612 = vsel %vm415, %v566, %v590
        %v613 = vsel %vm415, %v568, %v592
        %v614 = vsel %vm415, %v570, %v594
        %v615 = vsel %vm415, %v572, %v596
        %v616 = vsel %vm415, %v574, %v598
        %v617 = vsel %vm415, %v576, %v600
        %v618 = vsel %vm415, %v578, %v602
        %v619 = vmul.f32 %v547, %v427
        %v620 = vmul.f32 %v548, %v431
        %v621 = vmul.f32 %v549, %v435
        %v622 = vmul.f32 %v550, %v439
        %v623 = vmul.f32 %v551, %v443
        %v624 = vmul.f32 %v552, %v447
        %v625 = vmul.f32 %v553, %v451
        %v626 = vmul.f32 %v554, %v455
        %v627 = vmul.f32 %v611, %v475
        %v628 = vmul.f32 %v612, %v479
        %v629 = vmul.f32 %v613, %v483
        %v630 = vmul.f32 %v614, %v487
        %v631 = vmul.f32 %v615, %v491
        %v632 = vmul.f32 %v616, %v495
        %v633 = vmul.f32 %v617, %v499
        %v634 = vmul.f32 %v618, %v503
        %v635 = vadd.f32 %v619, %v627
        %v636 = vadd.f32 %v620, %v628
        %v637 = vadd.f32 %v621, %v629
        %v638 = vadd.f32 %v622, %v630
        %v639 = vadd.f32 %v623, %v631
        %v640 = vadd.f32 %v624, %v632
        %v641 = vadd.f32 %v625, %v633
        %v642 = vadd.f32 %v626, %v634
        %v643 = vsel %vm528, %v635, %v547
        %v644 = vsel %vm528, %v636, %v548
        %v645 = vsel %vm528, %v637, %v549
        %v646 = vsel %vm528, %v638, %v550
        %v647 = vsel %vm528, %v639, %v551
        %v648 = vsel %vm528, %v640, %v552
        %v649 = vsel %vm528, %v641, %v553
        %v650 = vsel %vm528, %v642, %v554
        %s651 = scalar_lea.vmem %s246, 4 [#allocation8]
        %652 = vst.msk [vmem:[%s651] sm:$0xf] %vm537, %v643
        %653 = vst.msk [vmem:[%s651 + $0xc] sm:$0xf] %vm537, %v644
        %654 = vst.msk [vmem:[%s651 + $0x18] sm:$0xf] %vm537, %v645
        %655 = vst.msk [vmem:[%s651 + $0x24] sm:$0xf] %vm537, %v646
        %656 = vst.msk [vmem:[%s651 + $0x30] sm:$0xf] %vm537, %v647
        %657 = vst.msk [vmem:[%s651 + $0x3c] sm:$0xf] %vm537, %v648
        %658 = vst.msk [vmem:[%s651 + $0x48] sm:$0xf] %vm537, %v649
        %659 = vst.msk [vmem:[%s651 + $0x54] sm:$0xf] %vm537, %v650
        %s660 = scalar_lea.vmem %s216, 8 [#allocation2]
        %v661 = vld [vmem:[%s660] sm:$0xf]
        %v662 = vld [vmem:[%s660 + $0xc] sm:$0xf]
        %v663 = vld [vmem:[%s660 + $0x18] sm:$0xf]
        %v664 = vld [vmem:[%s660 + $0x24] sm:$0xf]
        %v665 = vld [vmem:[%s660 + $0x30] sm:$0xf]
        %v666 = vld [vmem:[%s660 + $0x3c] sm:$0xf]
        %v667 = vld [vmem:[%s660 + $0x48] sm:$0xf]
        %v668 = vld [vmem:[%s660 + $0x54] sm:$0xf]
        %s669 = scalar_lea.vmem %s246, 8 [#allocation8]
        %670 = vst.msk [vmem:[%s669] sm:$0xf] %vm537, %v661
        %671 = vst.msk [vmem:[%s669 + $0xc] sm:$0xf] %vm537, %v662
        %672 = vst.msk [vmem:[%s669 + $0x18] sm:$0xf] %vm537, %v663
        %673 = vst.msk [vmem:[%s669 + $0x24] sm:$0xf] %vm537, %v664
        %674 = vst.msk [vmem:[%s669 + $0x30] sm:$0xf] %vm537, %v665
        %675 = vst.msk [vmem:[%s669 + $0x3c] sm:$0xf] %vm537, %v666
        %676 = vst.msk [vmem:[%s669 + $0x48] sm:$0xf] %vm537, %v667
        %677 = vst.msk [vmem:[%s669 + $0x54] sm:$0xf] %vm537, %v668
        %s678 = sand.u32 %s123, 1
        %s679 = scalar_lea.sflag [#allocation4], %s678
        %s680 = sand.u32 %s123, 1
        %s681 = smul.addr %s680, 96
        %s682 = scalar_lea.vmem [#allocation8], %s681
        // Predicated region
        $region45: #{tpu_custom_call.1} parent=31 // pred_check
          %p683 = pneg %p133
        $region46: #{tpu_custom_call.1} parent=31 // pred_check_branch
          %685 = sbr.rel (%p683) target = $region48
        $region47: #{tpu_custom_call.1} parent=31 // pred_region
          %s686 = smul.u32 8, %s25
          %s688 = ssub.s32 1536, 1536
          %689 = vsyncadd %s679, %s688
          %s690 = smul.addr %s686, 3
          %s691 = smul.addr %s26, 24
          %s692 = sadd.s32 %s690, %s691
          %s693 = smul.addr %s692, 64
          %s694 = scalar_lea.hbm %s3, %s693
          %s695 = sshll.u32 %s682, 4
          %s696 = int_to_ptr.vmem [resolvable:$true] %s695
          %701 = dma.vmem_to_hbm [thread:$0]  %s696, 1536, %s694, %s679, 64, 64, 4
        $region48: #{tpu_custom_call.1} parent=31 // pred_fallthru
          _
      $region32: #{tpu_custom_call.1} parent=5 // pred_fallthru
        _
      %p702 = scmp.le.s32.totalorder 2, %s16
      // Predicated region
      $region49: #{tpu_custom_call.1} parent=5 // pred_check
        %p703 = pneg %p702
      $region50: #{tpu_custom_call.1} parent=5 // pred_check_branch
        %705 = sbr.rel (%p703) target = $region52
      $region51: #{tpu_custom_call.1} parent=5 // pred_region
        %s706 = ssub.s32 %s16, 2
        // Predicated region
        $region53: #{tpu_custom_call.1} parent=51 // pred_check
          %p707 = pneg %p139
        $region54: #{tpu_custom_call.1} parent=51 // pred_check_branch
          %709 = sbr.rel (%p707) target = $region56
        $region55: #{tpu_custom_call.1} parent=51 // pred_region
          %s710 = sand.u32 %s124, 1
          %s711 = scalar_lea.sflag [#allocation4], %s710
          %s712 = sand.u32 %s124, 1
          %s713 = smul.addr %s712, 96
          %s714 = scalar_lea.vmem [#allocation8], %s713
          %715 = dma.done %s711, 1536
        $region56: #{tpu_custom_call.1} parent=51 // pred_fallthru
          _
      $region52: #{tpu_custom_call.1} parent=5 // pred_fallthru
        _
    $region6: #{tpu_custom_call.1} parent=1 // loop_footer
      %s20 = sadd.s32 1, %s16
    $region7: #{tpu_custom_call.1} parent=1 // loop_footer_branch
      %15 = sbr.rel target = $region3
    $region8: #{tpu_custom_call.1} parent=1 // loop_exit
      _
    %716 = vsyncpa [#allocation3], 1
    %s717 = scalar_lea.sflag [#allocation3], 1
    %718 = vsyncpa %s717, 1
    %719 = vsyncpa [#allocation6], 1
    %720 = vsyncpa [#allocation4], 1
    %s721 = scalar_lea.sflag [#allocation4], 1
    %722 = vsyncpa %s721, 1

</llo_original>
